<compile_context>
chip_gen: v7x
topology: tpu7x:2x2x1
jax: 0.10.0
libtpu: 0.0.40
codegen_flags: <defaults>
</compile_context>

<pallas_src>
import functools
import math

import jax
import jax.numpy as jnp
import numpy as np
from jax import lax
from jax.experimental import pallas as pl
from jax.experimental.pallas import tpu as pltpu

_NEG_BIG = -1e30


def _round_up(x, m):
    return (x + m - 1) // m * m


def _encoder_kernel(x_ref, mask_ref, w_ref, b_ref, o_ref, inter_ref, *,
                    c_pad, tile_m):
    layer = pl.program_id(0)
    n_layers = pl.num_programs(0)
    r = pl.program_id(1)
    row0 = pl.multiple_of(r * tile_m, tile_m)

    # Additive edge mask rows for this dst tile: 0 (edge) / -1e30 (no edge).
    mask_add = mask_ref[...].astype(jnp.float32)                 # (tile_m, N)

    # Current layer's input: original x for layer 0, the VMEM-resident bf16
    # intermediate for later layers (select is a cheap VPU op; never hits HBM).
    x_full = jnp.where(layer == 0, x_ref[...], inter_ref[...])            # (N, C)
    x_tile = jnp.where(layer == 0,
                       x_ref[pl.ds(row0, tile_m), :],
                       inter_ref[pl.ds(row0, tile_m), :])                 # (tile_m, C)

    # Packed weights: [Wq*(1/sqrt(C)) | Ws | Wk | Wv]  (bf16); biases f32.
    w_qs = w_ref[:, :2 * c_pad]
    w_kv = w_ref[:, 2 * c_pad:]
    b_qs = b_ref[:, :2 * c_pad].astype(jnp.float32)
    b_kv = b_ref[:, 2 * c_pad:].astype(jnp.float32)

    # Q / skip only for this dst tile; K / V for the whole graph.
    # bf16 MXU operands, f32 accumulate.
    qs = jnp.dot(x_tile, w_qs, preferred_element_type=jnp.float32) + b_qs
    kv = jnp.dot(x_full, w_kv, preferred_element_type=jnp.float32) + b_kv
    q = qs[:, :c_pad]            # 1/sqrt(C_out) already folded into Wq/bq
    skip = qs[:, c_pad:]
    k = kv[:, :c_pad]
    v = kv[:, c_pad:]

    # scores[i, j] = q_i . k_j  (i = dst, j = src); contract on dim 1 of both
    # operands (no materialized k.T).
    scores = lax.dot_general(q.astype(jnp.bfloat16), k.astype(jnp.bfloat16),
                             (((1,), (1,)), ((), ())),
                             preferred_element_type=jnp.float32)
    masked = scores + mask_add

    # Numerically stable masked softmax over sources (axis -1); non-edges
    # underflow to exactly 0 in exp().
    m = jnp.max(masked, axis=-1, keepdims=True)
    m = jnp.where(m > 0.5 * _NEG_BIG, m, 0.0)        # rows with no in-edges
    e = jnp.exp(masked - m)
    denom = jnp.sum(e, axis=-1, keepdims=True)
    alpha = e * pl.reciprocal(jnp.where(denom > 0.0, denom, 1.0), approx=True)

    # bf16 aggregation matmul (flash-attention style p.astype(v.dtype)).
    agg = jnp.dot(alpha.astype(jnp.bfloat16), v.astype(jnp.bfloat16),
                  preferred_element_type=jnp.float32)
    out = jnp.maximum(agg + skip, 0.0)               # (tile_m, C) f32

    @pl.when(layer < n_layers - 1)
    def _():
        inter_ref[pl.ds(row0, tile_m), :] = out.astype(inter_ref.dtype)

    @pl.when(layer == n_layers - 1)
    def _():
        o_ref[...] = out.astype(o_ref.dtype)


def transformer_encoder(x, adj, layer_params):
    """Whole TransformerEncoder in ONE pallas_call with (layer, row-tile) grid.

    x:            (N, C_in0) f32 node features
    adj:          (N, N) f32 dense adjacency, adj[dst, src] = 1.0 for edges
    layer_params: list of dicts {"wq","bq","wk","bk","wv","bv","ws","bs"}
    """
    depth = len(layer_params)
    n, c_in0 = x.shape
    c_outs = [p["wq"].shape[1] for p in layer_params]
    c_ins = [p["wq"].shape[0] for p in layer_params]

    # Uniform padded channel width, multiple of 32 so the fused projection
    # width 4*C is a multiple of 128 lanes (lane-dense MXU output).
    c_pad = _round_up(max(c_ins + c_outs), 32)

    n8 = _round_up(n, 8)
    tile_m = n8 if n8 <= 512 else 256
    n_pad = _round_up(n8, tile_m)

    # --- pack parameters: per layer [Wq*scale | Ws | Wk | Wv], zero-padded ---
    w_stack, b_stack = [], []
    for p in layer_params:
        ci, co = p["wq"].shape
        scale = jnp.float32(1.0 / math.sqrt(co))

        def pad_w(w, _ci=ci, _co=co):
            return jnp.zeros((c_pad, c_pad), jnp.float32).at[:_ci, :_co].set(w)

        def pad_b(b, _co=co):
            return jnp.zeros((1, c_pad), jnp.float32).at[:, :_co].set(b)

        w_stack.append(jnp.concatenate(
            [pad_w(p["wq"] * scale), pad_w(p["ws"]),
             pad_w(p["wk"]), pad_w(p["wv"])], axis=1))
        b_stack.append(jnp.concatenate(
            [pad_b(p["bq"] * scale), pad_b(p["bs"]),
             pad_b(p["bk"]), pad_b(p["bv"])], axis=1))
    w_stacked = jnp.stack(w_stack).astype(jnp.bfloat16)      # (depth, C, 4C)
    b_stacked = jnp.stack(b_stack).astype(jnp.float32)       # (depth, 1, 4C)

    # --- pad node dim; bf16 inputs for MXU / halved VMEM footprint ---
    x_p = jnp.zeros((n_pad, c_pad), jnp.float32).at[:n, :c_in0].set(x)
    x_p = x_p.astype(jnp.bfloat16)
    adj_p = jnp.zeros((n_pad, n_pad), jnp.float32).at[:n, :n].set(adj)
    mask_add = jnp.where(adj_p > 0.0, 0.0, _NEG_BIG).astype(jnp.bfloat16)

    grid = (depth, n_pad // tile_m)

    out = pl.pallas_call(
        functools.partial(_encoder_kernel, c_pad=c_pad, tile_m=tile_m),
        out_shape=jax.ShapeDtypeStruct((n_pad, c_pad), jnp.float32),
        grid_spec=pltpu.PrefetchScalarGridSpec(
            num_scalar_prefetch=0,
            grid=grid,
            in_specs=[
                # x: full graph, VMEM-resident across the whole grid
                pl.BlockSpec((n_pad, c_pad), lambda l, r: (0, 0)),
                # mask: streamed dst-row tiles (double-buffered by Pallas)
                pl.BlockSpec((tile_m, n_pad), lambda l, r: (r, 0)),
                # per-layer fused weights / biases (leading layer dim squeezed)
                pl.BlockSpec((None, c_pad, 4 * c_pad), lambda l, r: (l, 0, 0)),
                pl.BlockSpec((None, 1, 4 * c_pad), lambda l, r: (l, 0, 0)),
            ],
            out_specs=pl.BlockSpec((tile_m, c_pad), lambda l, r: (r, 0)),
            # layer-L output for the whole graph (bf16) -> next layer's input
            scratch_shapes=[pltpu.VMEM((n_pad, c_pad), jnp.bfloat16)],
        ),
        compiler_params=pltpu.CompilerParams(
            # Row tiles of layer L+1 read the full layer-L intermediate from
            # the shared VMEM scratch, so the row axis must stay "arbitrary"
            # in this fused single-call form.
            # TODO(synk): for large N on v7x, split into one pallas_call per
            # layer with a "parallel" row axis to use both TensorCores.
            dimension_semantics=("arbitrary", "arbitrary"),
            vmem_limit_bytes=32 * 1024 * 1024,
        ),
    )(x_p, mask_add, w_stacked, b_stacked)

    return out[:n, :c_outs[-1]]


def _reference_layer(x, adj, p):
    c_out = p["wq"].shape[1]
    q = x @ p["wq"] + p["bq"]
    k = x @ p["wk"] + p["bk"]
    v = x @ p["wv"] + p["bv"]
    skip = x @ p["ws"] + p["bs"]
    scores = (q @ k.T) / math.sqrt(c_out)
    mask = adj > 0.0
    masked = jnp.where(mask, scores, _NEG_BIG)
    m = jnp.max(masked, axis=-1, keepdims=True)
    m = jnp.where(m > 0.5 * _NEG_BIG, m, 0.0)
    e = jnp.where(mask, jnp.exp(masked - m), 0.0)
    denom = jnp.sum(e, axis=-1, keepdims=True)
    alpha = e / jnp.where(denom > 0.0, denom, 1.0)
    return jnp.maximum(alpha @ v + skip, 0.0)


def _init_layer_params(key, c_in, c_out):
    ks = jax.random.split(key, 8)
    lim = 1.0 / math.sqrt(c_in)

    def w(k):  # (c_in, c_out) so x @ w matches torch Linear(x) with w = W.T
        return jax.random.uniform(k, (c_in, c_out), jnp.float32, -lim, lim)

    def b(k):
        return jax.random.uniform(k, (1, c_out), jnp.float32, -lim, lim)

    return {"wq": w(ks[0]), "bq": b(ks[1]),
            "wk": w(ks[2]), "bk": b(ks[3]),
            "wv": w(ks[4]), "bv": b(ks[5]),
            "ws": w(ks[6]), "bs": b(ks[7])}


if __name__ == "__main__":
    # Module config: depth=2, in_channels=[8, 32], out_channels=[32, 16],
    # num_heads=1 (default), edge_dim=None, dropout=0.0
    in_channels = [8, 32]
    out_channels = [32, 16]
    depth = 2
    num_nodes = 16

    key = jax.random.PRNGKey(0)
    kx, kp = jax.random.split(key)
    x = jax.random.normal(kx, (num_nodes, in_channels[0]), jnp.float32)

    # Deterministic edge_index (2, E): ring + skip-2 connections, no duplicates.
    src = np.concatenate([np.arange(num_nodes), np.arange(num_nodes)])
    dst = np.concatenate([(np.arange(num_nodes) + 1) % num_nodes,
                          (np.arange(num_nodes) + 2) % num_nodes])
    edge_index = jnp.asarray(np.stack([src, dst]), jnp.int32)   # (2, E)

    # Dense adjacency adj[dst, src] = 1.0, computed once in the JAX glue.
    adj = jnp.zeros((num_nodes, num_nodes), jnp.float32)
    adj = adj.at[edge_index[1], edge_index[0]].set(1.0)

    layer_keys = jax.random.split(kp, depth)
    layer_params = [_init_layer_params(layer_keys[i], in_channels[i], out_channels[i])
                    for i in range(depth)]

    out = transformer_encoder(x, adj, layer_params)
    out = jax.block_until_ready(out)

    # Cross-check against a pure-JAX f32 reference of the same math.
    ref = x
    for p in layer_params:
        ref = _reference_layer(ref, adj, p)

    assert out.shape == (num_nodes, out_channels[-1])
    # Tolerance accounts for bf16 MXU operands + bf16 resident intermediate +
    # the EUP approx reciprocal, compounded over 2 layers, vs. the f32 ref.
    max_err = float(jnp.max(jnp.abs(out - ref)))
    assert bool(jnp.allclose(out, ref, atol=4e-2, rtol=4e-2)), max_err

    print("KERNEL_OK")
</pallas_src>

<mosaic_0001>
module attributes {stable_mosaic.version = 11 : i64} {
  func.func @_encoder_kernel(%arg0: i32, %arg1: i32, %arg2: memref<16x32xbf16, #tpu.memory_space<vmem>>, %arg3: memref<16x16xbf16, #tpu.memory_space<vmem>>, %arg4: memref<1x32x128xbf16, #tpu.memory_space<vmem>>, %arg5: memref<1x1x128xf32, #tpu.memory_space<vmem>>, %arg6: memref<16x32xf32, #tpu.memory_space<vmem>>, %arg7: memref<16x32xbf16, #tpu.memory_space<vmem>>) attributes {dimension_semantics = [#tpu.dimension_semantics<arbitrary>, #tpu.dimension_semantics<arbitrary>], iteration_bounds = array<i64: 2, 1>, scalar_prefetch = 0 : i64, scratch_operands = 1 : i64, tpu.core_type = #tpu.core_type<tc>, window_params = [{pipeline_mode = #tpu.pipeline_mode<synchronous>, transform_indices = @transform_0, window_bounds = array<i64: 16, 32>}, {transform_indices = @transform_1, window_bounds = array<i64: 16, 16>}, {transform_indices = @transform_2, window_bounds = array<i64: 1, 32, 128>}, {transform_indices = @transform_3, window_bounds = array<i64: 1, 1, 128>}, {transform_indices = @transform_4, window_bounds = array<i64: 16, 32>}]} {
    %c16_i32 = arith.constant 16 : i32
    %0 = arith.muli %arg1, %c16_i32 : i32
    %1 = tpu.assume_multiple %0, 16 : i32
    %c0 = arith.constant 0 : index
    %c0_0 = arith.constant 0 : index
    %2 = vector.load %arg3[%c0, %c0_0] : memref<16x16xbf16, #tpu.memory_space<vmem>>, vector<16x16xbf16>
    %3 = arith.extf %2 : vector<16x16xbf16> to vector<16x16xf32>
    %c0_i32 = arith.constant 0 : i32
    %4 = arith.cmpi eq, %arg0, %c0_i32 : i32
    %c0_1 = arith.constant 0 : index
    %c0_2 = arith.constant 0 : index
    %5 = vector.load %arg2[%c0_1, %c0_2] : memref<16x32xbf16, #tpu.memory_space<vmem>>, vector<16x32xbf16>
    %c0_3 = arith.constant 0 : index
    %c0_4 = arith.constant 0 : index
    %6 = vector.load %arg7[%c0_3, %c0_4] : memref<16x32xbf16, #tpu.memory_space<vmem>>, vector<16x32xbf16>
    %7 = arith.select %4, %5, %6 : vector<16x32xbf16>
    %c0_i32_5 = arith.constant 0 : i32
    %8 = arith.cmpi eq, %arg0, %c0_i32_5 : i32
    %9 = arith.index_cast %1 : i32 to index
    %c0_6 = arith.constant 0 : index
    %10 = vector.load %arg2[%9, %c0_6] : memref<16x32xbf16, #tpu.memory_space<vmem>>, vector<16x32xbf16>
    %11 = arith.index_cast %1 : i32 to index
    %c0_7 = arith.constant 0 : index
    %12 = vector.load %arg7[%11, %c0_7] : memref<16x32xbf16, #tpu.memory_space<vmem>>, vector<16x32xbf16>
    %13 = arith.select %8, %10, %12 : vector<16x32xbf16>
    %c0_8 = arith.constant 0 : index
    %c0_9 = arith.constant 0 : index
    %c0_10 = arith.constant 0 : index
    %14 = vector.load %arg4[%c0_8, %c0_9, %c0_10] : memref<1x32x128xbf16, #tpu.memory_space<vmem>>, vector<1x32x64xbf16>
    %15 = vector.shape_cast %14 : vector<1x32x64xbf16> to vector<32x64xbf16>
    %c0_11 = arith.constant 0 : index
    %c0_12 = arith.constant 0 : index
    %c64 = arith.constant 64 : index
    %16 = vector.load %arg4[%c0_11, %c0_12, %c64] : memref<1x32x128xbf16, #tpu.memory_space<vmem>>, vector<1x32x64xbf16>
    %17 = vector.shape_cast %16 : vector<1x32x64xbf16> to vector<32x64xbf16>
    %c0_13 = arith.constant 0 : index
    %c0_14 = arith.constant 0 : index
    %c0_15 = arith.constant 0 : index
    %18 = vector.load %arg5[%c0_13, %c0_14, %c0_15] : memref<1x1x128xf32, #tpu.memory_space<vmem>>, vector<1x1x64xf32>
    %19 = vector.shape_cast %18 : vector<1x1x64xf32> to vector<1x64xf32>
    %c0_16 = arith.constant 0 : index
    %c0_17 = arith.constant 0 : index
    %c64_18 = arith.constant 64 : index
    %20 = vector.load %arg5[%c0_16, %c0_17, %c64_18] : memref<1x1x128xf32, #tpu.memory_space<vmem>>, vector<1x1x64xf32>
    %21 = vector.shape_cast %20 : vector<1x1x64xf32> to vector<1x64xf32>
    %cst = arith.constant dense<0.000000e+00> : vector<16x64xf32>
    %22 = tpu.matmul %13, %15, %cst {dimension_numbers = #tpu.dot_dimension_numbers<[1], [0], [0], [1], [0, 0, 1, 1], [], []>} : vector<16x32xbf16>, vector<32x64xbf16>, vector<16x64xf32> -> vector<16x64xf32>
    %23 = vector.broadcast %19 : vector<1x64xf32> to vector<16x64xf32>
    %24 = arith.addf %22, %23 : vector<16x64xf32>
    %cst_19 = arith.constant dense<0.000000e+00> : vector<16x64xf32>
    %25 = tpu.matmul %7, %17, %cst_19 {dimension_numbers = #tpu.dot_dimension_numbers<[1], [0], [0], [1], [0, 0, 1, 1], [], []>} : vector<16x32xbf16>, vector<32x64xbf16>, vector<16x64xf32> -> vector<16x64xf32>
    %26 = vector.broadcast %21 : vector<1x64xf32> to vector<16x64xf32>
    %27 = arith.addf %25, %26 : vector<16x64xf32>
    %28 = vector.extract_strided_slice %24 {offsets = [0, 0], sizes = [16, 32], strides = [1, 1]} : vector<16x64xf32> to vector<16x32xf32>
    %29 = vector.extract_strided_slice %24 {offsets = [0, 32], sizes = [16, 32], strides = [1, 1]} : vector<16x64xf32> to vector<16x32xf32>
    %30 = vector.extract_strided_slice %27 {offsets = [0, 0], sizes = [16, 32], strides = [1, 1]} : vector<16x64xf32> to vector<16x32xf32>
    %31 = vector.extract_strided_slice %27 {offsets = [0, 32], sizes = [16, 32], strides = [1, 1]} : vector<16x64xf32> to vector<16x32xf32>
    %32 = arith.truncf %28 : vector<16x32xf32> to vector<16x32xbf16>
    %33 = arith.truncf %30 : vector<16x32xf32> to vector<16x32xbf16>
    %cst_20 = arith.constant dense<0.000000e+00> : vector<16x16xf32>
    %34 = tpu.matmul %32, %33, %cst_20 {dimension_numbers = #tpu.dot_dimension_numbers<[1], [1], [0], [0], [0, 0, 1, 0], [], []>} : vector<16x32xbf16>, vector<16x32xbf16>, vector<16x16xf32> -> vector<16x16xf32>
    %35 = arith.addf %34, %3 : vector<16x16xf32>
    %cst_21 = arith.constant dense<0xFF800000> : vector<16xf32>
    %36 = vector.multi_reduction <maximumf>, %35, %cst_21 [1] : vector<16x16xf32> to vector<16xf32>
    %37 = vector.shape_cast %36 : vector<16xf32> to vector<16x1xf32>
    %cst_22 = arith.constant -5.000000e+29 : f32
    %38 = vector.broadcast %cst_22 : f32 to vector<16x1xf32>
    %39 = arith.cmpf ogt, %37, %38 : vector<16x1xf32>
    %cst_23 = arith.constant 0.000000e+00 : f32
    %40 = vector.broadcast %cst_23 : f32 to vector<16x1xf32>
    %41 = arith.select %39, %37, %40 : vector<16x1xi1>, vector<16x1xf32>
    %42 = vector.broadcast %41 : vector<16x1xf32> to vector<16x16xf32>
    %43 = arith.subf %35, %42 : vector<16x16xf32>
    %44 = math.exp %43 : vector<16x16xf32>
    %cst_24 = arith.constant dense<0.000000e+00> : vector<16xf32>
    %45 = vector.multi_reduction <add>, %44, %cst_24 [1] : vector<16x16xf32> to vector<16xf32>
    %46 = vector.shape_cast %45 : vector<16xf32> to vector<16x1xf32>
    %cst_25 = arith.constant 0.000000e+00 : f32
    %47 = vector.broadcast %cst_25 : f32 to vector<16x1xf32>
    %48 = arith.cmpf ogt, %46, %47 : vector<16x1xf32>
    %cst_26 = arith.constant 1.000000e+00 : f32
    %49 = vector.broadcast %cst_26 : f32 to vector<16x1xf32>
    %50 = arith.select %48, %46, %49 : vector<16x1xi1>, vector<16x1xf32>
    %51 = tpu.reciprocal %50 {approx = true} : vector<16x1xf32> -> vector<16x1xf32>
    %52 = vector.broadcast %51 : vector<16x1xf32> to vector<16x16xf32>
    %53 = arith.mulf %44, %52 : vector<16x16xf32>
    %54 = arith.truncf %53 : vector<16x16xf32> to vector<16x16xbf16>
    %55 = arith.truncf %31 : vector<16x32xf32> to vector<16x32xbf16>
    %cst_27 = arith.constant dense<0.000000e+00> : vector<16x32xf32>
    %56 = tpu.matmul %54, %55, %cst_27 {dimension_numbers = #tpu.dot_dimension_numbers<[1], [0], [0], [1], [0, 0, 1, 1], [], []>} : vector<16x16xbf16>, vector<16x32xbf16>, vector<16x32xf32> -> vector<16x32xf32>
    %57 = arith.addf %56, %29 : vector<16x32xf32>
    %cst_28 = arith.constant 0.000000e+00 : f32
    %58 = vector.broadcast %cst_28 : f32 to vector<16x32xf32>
    %59 = arith.maximumf %57, %58 : vector<16x32xf32>
    %c1_i32 = arith.constant 1 : i32
    %60 = arith.cmpi slt, %arg0, %c1_i32 : i32
    %61 = arith.extui %60 : i1 to i32
    %c0_i32_29 = arith.constant 0 : i32
    %62 = arith.cmpi ne, %61, %c0_i32_29 : i32
    scf.if %62 {
      %66 = arith.truncf %59 : vector<16x32xf32> to vector<16x32xbf16>
      %67 = arith.index_cast %1 : i32 to index
      %c0_32 = arith.constant 0 : index
      %68 = vector.load %arg7[%67, %c0_32] : memref<16x32xbf16, #tpu.memory_space<vmem>>, vector<16x32xbf16>
      tpu.vector_store %arg7[%67, %c0_32], %66 {strides = array<i32>} : memref<16x32xbf16, #tpu.memory_space<vmem>>, vector<16x32xbf16>,
    } else {
    }
    %c1_i32_30 = arith.constant 1 : i32
    %63 = arith.cmpi eq, %arg0, %c1_i32_30 : i32
    %64 = arith.extui %63 : i1 to i32
    %c0_i32_31 = arith.constant 0 : i32
    %65 = arith.cmpi ne, %64, %c0_i32_31 : i32
    scf.if %65 {
      %c0_32 = arith.constant 0 : index
      %c0_33 = arith.constant 0 : index
      %66 = vector.load %arg6[%c0_32, %c0_33] : memref<16x32xf32, #tpu.memory_space<vmem>>, vector<16x32xf32>
      tpu.vector_store %arg6[%c0_32, %c0_33], %59 {strides = array<i32>} : memref<16x32xf32, #tpu.memory_space<vmem>>, vector<16x32xf32>,
    } else {
    }
    return
  }
  func.func @transform_0(%arg0: i32, %arg1: i32) -> (i32, i32) {
    %c0_i32 = arith.constant 0 : i32
    %c0_i32_0 = arith.constant 0 : i32
    %c0_i32_1 = arith.constant 0 : i32
    return %c0_i32, %c0_i32_0 : i32, i32
  }
  func.func @transform_1(%arg0: i32, %arg1: i32) -> (i32, i32) {
    %c0_i32 = arith.constant 0 : i32
    %c0_i32_0 = arith.constant 0 : i32
    return %arg1, %c0_i32 : i32, i32
  }
  func.func @transform_2(%arg0: i32, %arg1: i32) -> (i32, i32, i32) {
    %c0_i32 = arith.constant 0 : i32
    %c0_i32_0 = arith.constant 0 : i32
    %c0_i32_1 = arith.constant 0 : i32
    return %arg0, %c0_i32, %c0_i32_0 : i32, i32, i32
  }
  func.func @transform_3(%arg0: i32, %arg1: i32) -> (i32, i32, i32) {
    %c0_i32 = arith.constant 0 : i32
    %c0_i32_0 = arith.constant 0 : i32
    %c0_i32_1 = arith.constant 0 : i32
    return %arg0, %c0_i32, %c0_i32_0 : i32, i32, i32
  }
  func.func @transform_4(%arg0: i32, %arg1: i32) -> (i32, i32) {
    %c0_i32 = arith.constant 0 : i32
    %c0_i32_0 = arith.constant 0 : i32
    return %arg1, %c0_i32 : i32, i32
  }
}

</mosaic_0001>

<llo_original>
// kernel: tpu_custom_call.1
$region0: #{tpu_custom_call.1}
  #allocation0 [shape = 'u32[]', space=smem, size = 0x4, offset = 0x4, fixed_abs, tag = 'smem constant byte address 0x4 - core index']
  #allocation1 [shape = 'u32[144,128]{1,0:T(1,128)}', space=vmem, size = 0x12000, scoped, tag = 'internal scratch']
  #allocation2 [shape = 'bf16[16,32]{1,0:T(16,128)(2,1)}', space=vmem, size = 0x1000, scoped, tag = 'scratch operand']
  %s0 = inlined_call_operand.hbm [shape: bf16[16,32], index: 0, kind: input, shape index: {}]
  %s1 = inlined_call_operand.hbm [shape: bf16[16,16], index: 1, kind: input, shape index: {}]
  %s2 = inlined_call_operand.hbm [shape: bf16[2,32,128], index: 2, kind: input, shape index: {}]
  %s3 = inlined_call_operand.vmem [shape: f32[2,1,128], index: 3, kind: input, shape index: {}]
  %s4 = inlined_call_operand.hbm [shape: f32[16,32], index: 4, kind: output, shape index: {}]
  %s5 = sld [smem:[#allocation0]]
  $region69: #{tpu_custom_call.1} parent=0
    _
  %s7 = ssub.s32 1, %s5
  %s8 = scalar_select 0, %s7, %s5
  $region1: #{tpu_custom_call.1} parent=0
    #allocation3 [shape = 'u8[4096]{0}', space=vmem, size = 0x1000, scoped, tag = 'input window, operand 0, single buffered']
    #allocation4 [shape = 's32[2]{0}', space=sflag, size = 0x8, scoped, tag = 'scoped memory for tpu_custom_call.1']
    #allocation5 [shape = 's32[2]{0}', space=sflag, size = 0x8, scoped, tag = 'scoped memory for tpu_custom_call.1']
    #allocation6 [shape = 'u8[4096]{0}', space=vmem, size = 0x1000, scoped, tag = 'input window, operand 1, single buffered']
    #allocation7 [shape = 's32[1]{0}', space=sflag, size = 0x4, scoped, tag = 'scoped memory for tpu_custom_call.1']
    #allocation8 [shape = 'u8[16384]{0}', space=vmem, size = 0x4000, scoped, tag = 'input window, operand 2']
    #allocation9 [shape = 'u8[8192]{0}', space=vmem, size = 0x2000, scoped, tag = 'output window, operand 0, single buffered']
    %9 = vsyncpa [#allocation4], 0
    %10 = vsyncpa [#allocation7], 0
    %11 = vsyncpa [#allocation5], 0
    loop: start=0, step=1, limit=4
    $region2: #{tpu_custom_call.1} parent=1 // loop_pre_header
      _
    $region3: #{tpu_custom_call.1} parent=1 // loop_header
      %s13 = sphi 0, %s17
      %p14 = scmp.ge.s32.totalorder %s13, 4
      %s20 = sphi 0, %s32
      %s21 = sphi 0, %s28
      %s22 = sphi 0, %s20
      %s23 = sphi 0, %s21
      %s24 = sphi 0, %s22
      %s25 = sphi 0, %s23
      %s33 = sphi 0, %s33
      %s35 = sphi 0, %s33
      %s36 = sphi 0, %s35
      %s50 = sphi 0, %s36
      %s56 = sphi 0, %s58
      %s59 = sphi 0, %s56
      %s60 = sphi 0, %s59
      %s76 = sphi 0, %s60
      %s82 = sphi 0, %s84
      %s85 = sphi 0, %s82
      %s86 = sphi 0, %s85
      %s102 = sphi 0, %s86
      %s108 = sphi 0, %s110
      %s111 = sphi 0, %s108
      %s112 = sphi 0, %s111
      %s128 = sphi 0, %s112
      %s134 = sphi 0, %s136
      %s137 = sphi 0, %s134
      %s138 = sphi 0, %s137
      %s154 = sphi 0, %s138
    $region4: #{tpu_custom_call.1} parent=1 // loop_header_branch
      %16 = sbr.rel (%p14) target = $region8
    $region5: #{tpu_custom_call.1} parent=1 // loop_body
      %s18 = ssub.s32 %s13, 1
      %s19 = ssub.s32 %s13, 2
      %s26 = sadd.s32 1, %s21
      %p27 = scmp.ge.s32.totalorder %s26, 1
      %s28 = scalar_select %p27, 0, %s26
      %s29 = sadd.s32 1, %s20
      %s30 = scalar_select %p27, %s29, %s20
      %p31 = scmp.ge.s32.totalorder %s30, 2
      %s32 = scalar_select %p31, 0, %s30
      %s34 = sadd.s32 %s33, 1
      %p37 = scmp.eq.s32.totalorder %s13, 1
      %p38 = scmp.ne.s32.totalorder %s33, %s35
      %p39 = scmp.eq.s32.totalorder %s13, 0
      %p40 = por %p38, %p39
      %p41 = scmp.ne.s32.totalorder %s33, %s35
      %p42 = scmp.eq.s32.totalorder %s18, 1
      %p43 = por %p41, %p42
      %p44 = scmp.ne.s32.totalorder %s35, %s36
      %p45 = scmp.eq.s32.totalorder %s18, 0
      %p46 = por %p44, %p45
      %p47 = scmp.ne.s32.totalorder %s35, %s36
      %p48 = scmp.eq.s32.totalorder %s19, 1
      %p49 = por %p47, %p48
      %p51 = scmp.ne.s32.totalorder %s36, %s50
      %p52 = scmp.eq.s32.totalorder %s19, 0
      %p53 = por %p51, %p52
      %s54 = ssub.s32 %s21, %s28
      %p55 = scmp.eq.s32.totalorder %s54, 0
      %s57 = sadd.s32 %s56, 1
      %s58 = scalar_select %p55, %s56, %s57
      %p61 = pneg %p55
      %p62 = scmp.eq.s32.totalorder %s13, 1
      %p63 = por %p61, %p62
      %p64 = scmp.ne.s32.totalorder %s56, %s59
      %p65 = scmp.eq.s32.totalorder %s13, 0
      %p66 = por %p64, %p65
      %p67 = scmp.ne.s32.totalorder %s56, %s59
      %p68 = scmp.eq.s32.totalorder %s18, 1
      %p69 = por %p67, %p68
      %p70 = scmp.ne.s32.totalorder %s59, %s60
      %p71 = scmp.eq.s32.totalorder %s18, 0
      %p72 = por %p70, %p71
      %p73 = scmp.ne.s32.totalorder %s59, %s60
      %p74 = scmp.eq.s32.totalorder %s19, 1
      %p75 = por %p73, %p74
      %p77 = scmp.ne.s32.totalorder %s60, %s76
      %p78 = scmp.eq.s32.totalorder %s19, 0
      %p79 = por %p77, %p78
      %s80 = ssub.s32 %s20, %s32
      %p81 = scmp.eq.s32.totalorder %s80, 0
      %s83 = sadd.s32 %s82, 1
      %s84 = scalar_select %p81, %s82, %s83
      %p87 = pneg %p81
      %p88 = scmp.eq.s32.totalorder %s13, 1
      %p89 = por %p87, %p88
      %p90 = scmp.ne.s32.totalorder %s82, %s85
      %p91 = scmp.eq.s32.totalorder %s13, 0
      %p92 = por %p90, %p91
      %p93 = scmp.ne.s32.totalorder %s82, %s85
      %p94 = scmp.eq.s32.totalorder %s18, 1
      %p95 = por %p93, %p94
      %p96 = scmp.ne.s32.totalorder %s85, %s86
      %p97 = scmp.eq.s32.totalorder %s18, 0
      %p98 = por %p96, %p97
      %p99 = scmp.ne.s32.totalorder %s85, %s86
      %p100 = scmp.eq.s32.totalorder %s19, 1
      %p101 = por %p99, %p100
      %p103 = scmp.ne.s32.totalorder %s86, %s102
      %p104 = scmp.eq.s32.totalorder %s19, 0
      %p105 = por %p103, %p104
      %s106 = ssub.s32 %s20, %s32
      %p107 = scmp.eq.s32.totalorder %s106, 0
      %s109 = sadd.s32 %s108, 1
      %s110 = scalar_select %p107, %s108, %s109
      %p113 = pneg %p107
      %p114 = scmp.eq.s32.totalorder %s13, 1
      %p115 = por %p113, %p114
      %p116 = scmp.ne.s32.totalorder %s108, %s111
      %p117 = scmp.eq.s32.totalorder %s13, 0
      %p118 = por %p116, %p117
      %p119 = scmp.ne.s32.totalorder %s108, %s111
      %p120 = scmp.eq.s32.totalorder %s18, 1
      %p121 = por %p119, %p120
      %p122 = scmp.ne.s32.totalorder %s111, %s112
      %p123 = scmp.eq.s32.totalorder %s18, 0
      %p124 = por %p122, %p123
      %p125 = scmp.ne.s32.totalorder %s111, %s112
      %p126 = scmp.eq.s32.totalorder %s19, 1
      %p127 = por %p125, %p126
      %p129 = scmp.ne.s32.totalorder %s112, %s128
      %p130 = scmp.eq.s32.totalorder %s19, 0
      %p131 = por %p129, %p130
      %s132 = ssub.s32 %s21, %s28
      %p133 = scmp.eq.s32.totalorder %s132, 0
      %s135 = sadd.s32 %s134, 1
      %s136 = scalar_select %p133, %s134, %s135
      %p139 = pneg %p133
      %p140 = scmp.eq.s32.totalorder %s13, 1
      %p141 = por %p139, %p140
      %p142 = scmp.ne.s32.totalorder %s134, %s137
      %p143 = scmp.eq.s32.totalorder %s13, 0
      %p144 = por %p142, %p143
      %p145 = scmp.ne.s32.totalorder %s134, %s137
      %p146 = scmp.eq.s32.totalorder %s18, 1
      %p147 = por %p145, %p146
      %p148 = scmp.ne.s32.totalorder %s137, %s138
      %p149 = scmp.eq.s32.totalorder %s18, 0
      %p150 = por %p148, %p149
      %p151 = scmp.ne.s32.totalorder %s137, %s138
      %p152 = scmp.eq.s32.totalorder %s19, 1
      %p153 = por %p151, %p152
      %p155 = scmp.ne.s32.totalorder %s138, %s154
      %p156 = scmp.eq.s32.totalorder %s19, 0
      %p157 = por %p155, %p156
      %p158 = scmp.le.s32.totalorder 1, %s13
      %p159 = scmp.lt.s32.totalorder %s13, 3
      %p160 = pnand %p158, %p159
      %p161 = pneg %p160
      // Predicated region
      $region9: #{tpu_custom_call.1} parent=5 // pred_check
        _
      $region10: #{tpu_custom_call.1} parent=5 // pred_check_branch
        %163 = sbr.rel (%p160) target = $region12
      $region11: #{tpu_custom_call.1} parent=5 // pred_region
        %s164 = ssub.s32 %s13, 1
        // Predicated region
        $region13: #{tpu_custom_call.1} parent=11 // pred_check
          %p165 = pneg %p46
        $region14: #{tpu_custom_call.1} parent=11 // pred_check_branch
          %167 = sbr.rel (%p165) target = $region16
        $region15: #{tpu_custom_call.1} parent=11 // pred_region
          %s169 = ssub.s32 128, 128
          %170 = vsyncadd [#allocation4], %s169
          %s171 = sshll.u32 [#allocation3], 4
          %s172 = int_to_ptr.vmem [resolvable:$true] %s171
          %177 = dma.hbm_to_vmem [thread:$0]  %s0, 128, %s172, [#allocation4], 64, 64, 4
        $region16: #{tpu_custom_call.1} parent=11 // pred_fallthru
          _
        // Predicated region
        $region17: #{tpu_custom_call.1} parent=11 // pred_check
          %p178 = pneg %p72
        $region18: #{tpu_custom_call.1} parent=11 // pred_check_branch
          %180 = sbr.rel (%p178) target = $region20
        $region19: #{tpu_custom_call.1} parent=11 // pred_region
          %s181 = smul.u32 2, %s23
          %s183 = ssub.s32 128, 128
          %184 = vsyncadd [#allocation7], %s183
          %s185 = smul.addr %s181, 64
          %s186 = scalar_lea.hbm %s1, %s185
          %s187 = sshll.u32 [#allocation6], 4
          %s188 = int_to_ptr.vmem [resolvable:$true] %s187
          %193 = dma.hbm_to_vmem [thread:$0]  %s186, 128, %s188, [#allocation7], 64, 64, 4
        $region20: #{tpu_custom_call.1} parent=11 // pred_fallthru
          _
      $region12: #{tpu_custom_call.1} parent=5 // pred_fallthru
        _
      %p194 = scmp.lt.s32.totalorder %s13, 2
      // Predicated region
      $region21: #{tpu_custom_call.1} parent=5 // pred_check
        %p195 = pneg %p194
      $region22: #{tpu_custom_call.1} parent=5 // pred_check_branch
        %197 = sbr.rel (%p195) target = $region24
      $region23: #{tpu_custom_call.1} parent=5 // pred_region
        // Predicated region
        $region25: #{tpu_custom_call.1} parent=23 // pred_check
          %p198 = pneg %p92
        $region26: #{tpu_custom_call.1} parent=23 // pred_check_branch
          %200 = sbr.rel (%p198) target = $region28
        $region27: #{tpu_custom_call.1} parent=23 // pred_region
          %s201 = sand.u32 %s13, 1
          %s202 = scalar_lea.sflag [#allocation4], %s201
          %s203 = sand.u32 %s82, 1
          %s204 = smul.addr %s203, 16
          %s205 = scalar_lea.vmem [#allocation8], %s204
          %s207 = ssub.s32 256, 256
          %208 = vsyncadd %s202, %s207
          %s209 = smul.addr %s20, 4
          %s210 = smul.addr %s209, 64
          %s211 = scalar_lea.hbm %s2, %s210
          %s212 = sshll.u32 %s205, 4
          %s213 = int_to_ptr.vmem [resolvable:$true] %s212
          %218 = dma.hbm_to_vmem [thread:$0]  %s211, 256, %s213, %s202, 64, 64, 4
        $region28: #{tpu_custom_call.1} parent=23 // pred_fallthru
          _
        // Predicated region
        $region29: #{tpu_custom_call.1} parent=23 // pred_check
          %p219 = pneg %p118
        $region30: #{tpu_custom_call.1} parent=23 // pred_check_branch
          %221 = sbr.rel (%p219) target = $region32
        $region31: #{tpu_custom_call.1} parent=23 // pred_region
          %p222 = scmp.lt.s32.totalorder %s20, 1
          %s223 = scalar_select %p222, %s20, 1
          %s224 = scalar_lea.vmem %s3, %s223
        $region32: #{tpu_custom_call.1} parent=23 // pred_fallthru
          _
      $region24: #{tpu_custom_call.1} parent=5 // pred_fallthru
        _
      %p225 = scmp.le.s32.totalorder 1, %s13
      %p226 = scmp.lt.s32.totalorder %s13, 3
      %p227 = pnand %p225, %p226
      %p228 = pneg %p227
      // Predicated region
      $region33: #{tpu_custom_call.1} parent=5 // pred_check
        _
      $region34: #{tpu_custom_call.1} parent=5 // pred_check_branch
        %230 = sbr.rel (%p227) target = $region36
      $region35: #{tpu_custom_call.1} parent=5 // pred_region
        %s231 = ssub.s32 %s13, 1
        // Predicated region
        $region37: #{tpu_custom_call.1} parent=35 // pred_check
          %p232 = pneg %p46
        $region38: #{tpu_custom_call.1} parent=35 // pred_check_branch
          %234 = sbr.rel (%p232) target = $region40
        $region39: #{tpu_custom_call.1} parent=35 // pred_region
          %235 = dma.done [#allocation4], 128
        $region40: #{tpu_custom_call.1} parent=35 // pred_fallthru
          _
        // Predicated region
        $region41: #{tpu_custom_call.1} parent=35 // pred_check
          %p236 = pneg %p72
        $region42: #{tpu_custom_call.1} parent=35 // pred_check_branch
          %238 = sbr.rel (%p236) target = $region44
        $region43: #{tpu_custom_call.1} parent=35 // pred_region
          %239 = dma.done [#allocation7], 128
        $region44: #{tpu_custom_call.1} parent=35 // pred_fallthru
          _
        %s240 = sand.u32 %s18, 1
        %s241 = scalar_lea.sflag [#allocation4], %s240
        %s242 = sand.u32 %s85, 1
        %s243 = smul.addr %s242, 16
        %s244 = scalar_lea.vmem [#allocation8], %s243
        // Predicated region
        $region45: #{tpu_custom_call.1} parent=35 // pred_check
          %p245 = pneg %p98
        $region46: #{tpu_custom_call.1} parent=35 // pred_check_branch
          %247 = sbr.rel (%p245) target = $region48
        $region47: #{tpu_custom_call.1} parent=35 // pred_region
          %248 = dma.done %s241, 256
        $region48: #{tpu_custom_call.1} parent=35 // pred_fallthru
          _
        %p249 = pneg %p46
        %p250 = pneg %p43
        %p251 = pneg %p72
        %p252 = pneg %p69
        %s253 = sand.u32 %s18, 1
        %s254 = scalar_lea.sflag [#allocation4], %s253
        %s255 = sand.u32 %s85, 1
        %s256 = smul.addr %s255, 16
        %s257 = scalar_lea.vmem [#allocation8], %s256
        %p258 = pneg %p98
        %p259 = pneg %p95
        %p260 = scmp.lt.s32.totalorder %s22, 1
        %s261 = scalar_select %p260, %s22, 1
        %s262 = scalar_lea.vmem %s3, %s261
        %p263 = pneg %p124
        %p264 = pneg %p121
        %p265 = pneg %p150
        %p266 = pneg %p147
        %s267 = smul.u32 2, %s23
        %p268 = scmp.lt.s32.totalorder %s22, 1
        %s269 = scalar_select %p268, %s22, 1
        %s270 = scalar_lea.vmem %s3, %s269
        %s271 = smul.u32 2, %s23
        %s273 = smul.u32 %s23, 16
        %v274 = vld [vmem:[#allocation6] sm:$0xf]
        %v275 = vld [vmem:[#allocation6 + $0x4] sm:$0xf]
        %v276 = vunpack.c.l.bf16 %v274
        %v277 = vunpack.c.l.bf16 %v275
        %p278 = scmp.eq.s32.totalorder %s22, 0
        %v279 = vld [vmem:[#allocation3] sm:$0xf]
        %v280 = vld [vmem:[#allocation3 + $0x4] sm:$0xf]
        %v281 = vld [vmem:[#allocation2] sm:$0xff]
        %s282 = scalar_select %p278, 1, 0
        %v283 = vstv %s282
        %vm284 = vcmp.eq.s32.totalorder %v283, 1
        %v286 = vunpack.c.l.b16 %v281
        %v287 = vunpack.c.h.b16 %v281
        %v288 = vpack.c.b16 %v286, %v286
        %v289 = vpack.c.b16 %v287, %v287
        %v292 = vsel %vm284, %v279, %v288
        %v293 = vsel %vm284, %v280, %v289
        %s294 = sshra.s32 %s273, 3
        %s295 = sand.u32 %s273, 7
        %s296 = smul.addr %s294, 4
        %s297 = scalar_lea.vmem [#allocation3], %s296
        %v298 = vld [vmem:[%s297] sm:$0xf]
        %v299 = vld [vmem:[%s297 + $0x4] sm:$0xf]
        %s300 = sshra.s32 %s273, 4
        %s301 = sand.u32 %s273, 15
        %s302 = smul.addr %s300, 8
        %s303 = scalar_lea.vmem [#allocation2], %s302
        %v304 = vld [vmem:[%s303] sm:$0xff]
        %v306 = vunpack.c.l.b16 %v304
        %v307 = vunpack.c.h.b16 %v304
        %v308 = vpack.c.b16 %v306, %v306
        %v309 = vpack.c.b16 %v307, %v307
        %v312 = vsel %vm284, %v298, %v308
        %v313 = vsel %vm284, %v299, %v309
        %v314 = vld [vmem:[%s244] sm:$0xf]
        %v315 = vld [vmem:[%s244 + $0x4] sm:$0xf]
        %v316 = vld [vmem:[%s244 + $0x8] sm:$0xf]
        %v317 = vld [vmem:[%s244 + $0xc] sm:$0xf]
        %v318 = vld [vmem:[%s270] sm:$0x1]
        %v320 = vlaneseq
        %v321 = vshrl.u32 %v320, 7
        %v322 = vsub.s32 0, %v321
        %v323 = vrot.slane %v318, %v322
        %v327 = vunpack.c.l.b16 %v312
        %v328 = vunpack.c.l.b16 %v313
        %v329 = vpack.c.b16 %v328, %v327
        %v334 = vunpack.c.l.b16 %v314
        %v335 = vunpack.c.l.b16 %v315
        %v336 = vunpack.c.l.b16 %v316
        %v337 = vunpack.c.l.b16 %v317
        %v338 = vpack.c.b16 %v335, %v334
        %v339 = vpack.c.b16 %v337, %v336
        %vm342 = vcmask 261120
        %v344 = vsel %vm342, %v329, 0
        %346 = vmatprep.subr.bf16.mxu0 0
        %347 = vmatpush1.bf16.msra.mxu0 %v338
        %348 = vmatprep.subr.bf16.mxu0 0
        %349 = vmatpush1.bf16.msra.mxu0 %v339
        %350 = vmatprep.subr.bf16.mxu0 0
        %351 = vmatpush1.bf16.msra.mxu0 0
        %352 = vmatprep.subr.bf16.mxu0 0
        %353 = vmatpush1.bf16.msra.mxu0 0
        %354 = vmatprep.subr.bf16.mxu0 0
        %355 = vmatpush1.bf16.msra.mxu0 0
        %356 = vmatprep.subr.bf16.mxu0 0
        %357 = vmatpush1.bf16.msra.mxu0 0
        %358 = vmatprep.subr.bf16.mxu0 0
        %359 = vmatpush1.bf16.msra.mxu0 0
        %360 = vmatprep.subr.bf16.mxu0 0
        %361 = vmatpush1.bf16.msra.mxu0 0
        %362 = vmatprep.subr.bf16.mxu0 0
        %363 = vmatpush1.bf16.msra.mxu0 0
        %364 = vmatprep.subr.bf16.mxu0 0
        %365 = vmatpush1.bf16.msra.mxu0 0
        %366 = vmatprep.subr.bf16.mxu0 0
        %367 = vmatpush1.bf16.msra.mxu0 0
        %368 = vmatprep.subr.bf16.mxu0 0
        %369 = vmatpush1.bf16.msra.mxu0 0
        %370 = vmatprep.subr.bf16.mxu0 0
        %371 = vmatpush1.bf16.msra.mxu0 0
        %372 = vmatprep.subr.bf16.mxu0 0
        %373 = vmatpush1.bf16.msra.mxu0 0
        %374 = vmatprep.subr.bf16.mxu0 0
        %375 = vmatpush1.bf16.msra.mxu0 0
        %376 = vmatprep.subr.bf16.mxu0 0
        %377 = vmatpush1.bf16.msra.mxu0 0
        %378 = vmatprep.mubr.bf16.mxu0 0
        %379 = vmatmul.mubr.bf16.gmra.mrb[0].mxu0 %v344
        %v380 = vpop.f32.mrb[0].mxu0
        %v381 = vadd.f32 %v323, %v380
        %v382 = vpop.f32.mrb[0].mxu0
        %v383 = vpop.f32.mrb[0].mxu0
        %v384 = vadd.f32 %v323, %v383
        %v385 = vpop.f32.mrb[0].mxu0
        %386 = vdwg.mxu0
        %v389 = vunpack.c.l.b16 %v292
        %v390 = vunpack.c.l.b16 %v293
        %v391 = vpack.c.b16 %v390, %v389
        %392 = vrot.lane.b32.xlu0 %v338, 64
        %v393 = vpop.permute.xlu0 %392
        %394 = vrot.lane.b32.xlu0 %v339, 64
        %v395 = vpop.permute.xlu0 %394
        %398 = vrot.lane.b32.xlu0 %v323, 64
        %v399 = vpop.permute.xlu0 %398
        %v402 = vsel %vm342, %v391, 0
        %404 = vmatprep.subr.bf16.mxu0 0
        %405 = vmatpush1.bf16.msra.mxu0 %v393
        %406 = vmatprep.subr.bf16.mxu0 0
        %407 = vmatpush1.bf16.msra.mxu0 %v395
        %408 = vmatprep.subr.bf16.mxu0 0
        %409 = vmatpush1.bf16.msra.mxu0 0
        %410 = vmatprep.subr.bf16.mxu0 0
        %411 = vmatpush1.bf16.msra.mxu0 0
        %412 = vmatprep.subr.bf16.mxu0 0
        %413 = vmatpush1.bf16.msra.mxu0 0
        %414 = vmatprep.subr.bf16.mxu0 0
        %415 = vmatpush1.bf16.msra.mxu0 0
        %416 = vmatprep.subr.bf16.mxu0 0
        %417 = vmatpush1.bf16.msra.mxu0 0
        %418 = vmatprep.subr.bf16.mxu0 0
        %419 = vmatpush1.bf16.msra.mxu0 0
        %420 = vmatprep.subr.bf16.mxu0 0
        %421 = vmatpush1.bf16.msra.mxu0 0
        %422 = vmatprep.subr.bf16.mxu0 0
        %423 = vmatpush1.bf16.msra.mxu0 0
        %424 = vmatprep.subr.bf16.mxu0 0
        %425 = vmatpush1.bf16.msra.mxu0 0
        %426 = vmatprep.subr.bf16.mxu0 0
        %427 = vmatpush1.bf16.msra.mxu0 0
        %428 = vmatprep.subr.bf16.mxu0 0
        %429 = vmatpush1.bf16.msra.mxu0 0
        %430 = vmatprep.subr.bf16.mxu0 0
        %431 = vmatpush1.bf16.msra.mxu0 0
        %432 = vmatprep.subr.bf16.mxu0 0
        %433 = vmatpush1.bf16.msra.mxu0 0
        %434 = vmatprep.subr.bf16.mxu0 0
        %435 = vmatpush1.bf16.msra.mxu0 0
        %436 = vmatprep.mubr.bf16.mxu0 0
        %437 = vmatmul.mubr.bf16.gmra.mrb[0].mxu0 %v402
        %v438 = vpop.f32.mrb[0].mxu0
        %v439 = vadd.f32 %v399, %v438
        %v440 = vpop.f32.mrb[0].mxu0
        %v441 = vpop.f32.mrb[0].mxu0
        %v442 = vadd.f32 %v399, %v441
        %v443 = vpop.f32.mrb[0].mxu0
        %444 = vdwg.mxu0
        %v445 = vpack.c.bf16 %v384, %v381
        %v446 = vpack.c.bf16 %v442, %v439
        %v448 = vsel %vm342, %v445, 0
        %v451 = vsel %vm342, %v446, 0
        %453 = vmatprep.subr.bf16.mxu0 0
        %454 = vmatpush1.bf16.xpose.msra.mxu0 %v451
        %455 = vmatprep.subr.bf16.mxu0 0
        %456 = vmatpush1.bf16.xpose.msra.mxu0 0
        %457 = vmatprep.subr.bf16.mxu0 0
        %458 = vmatpush1.bf16.xpose.msra.mxu0 0
        %459 = vmatprep.subr.bf16.mxu0 0
        %460 = vmatpush1.bf16.xpose.msra.mxu0 0
        %461 = vmatprep.subr.bf16.mxu0 0
        %462 = vmatpush1.bf16.xpose.msra.mxu0 0
        %463 = vmatprep.subr.bf16.mxu0 0
        %464 = vmatpush1.bf16.xpose.msra.mxu0 0
        %465 = vmatprep.subr.bf16.mxu0 0
        %466 = vmatpush1.bf16.xpose.msra.mxu0 0
        %467 = vmatprep.subr.bf16.mxu0 0
        %468 = vmatpush1.bf16.xpose.msra.mxu0 0
        %469 = vmatprep.subr.bf16.mxu0 0
        %470 = vmatpush1.bf16.xpose.msra.mxu0 0
        %471 = vmatprep.subr.bf16.mxu0 0
        %472 = vmatpush1.bf16.xpose.msra.mxu0 0
        %473 = vmatprep.subr.bf16.mxu0 0
        %474 = vmatpush1.bf16.xpose.msra.mxu0 0
        %475 = vmatprep.subr.bf16.mxu0 0
        %476 = vmatpush1.bf16.xpose.msra.mxu0 0
        %477 = vmatprep.subr.bf16.mxu0 0
        %478 = vmatpush1.bf16.xpose.msra.mxu0 0
        %479 = vmatprep.subr.bf16.mxu0 0
        %480 = vmatpush1.bf16.xpose.msra.mxu0 0
        %481 = vmatprep.subr.bf16.mxu0 0
        %482 = vmatpush1.bf16.xpose.msra.mxu0 0
        %483 = vmatprep.subr.bf16.mxu0 0
        %484 = vmatpush1.bf16.xpose.msra.mxu0 0
        %485 = vmatprep.mubr.bf16.mxu0 0
        %486 = vmatmul.mubr.bf16.gmra.mrb[0].mxu0 %v448
        %v487 = vpop.f32.mrb[0].mxu0
        %v488 = vadd.f32 %v276, %v487
        %v489 = vpop.f32.mrb[0].mxu0
        %v490 = vpop.f32.mrb[0].mxu0
        %v491 = vadd.f32 %v277, %v490
        %v492 = vpop.f32.mrb[0].mxu0
        %493 = vdwg.mxu0
        %vm494 = vcmask 130048
        %v495 = vsel %vm494, %v488, -inf
        %496 = vmax.xlane.f32.xlu0 %v495
        %v497 = vpop.xlane.xlu0 %496
        %v498 = vsel %vm494, %v491, -inf
        %499 = vmax.xlane.f32.xlu0 %v498
        %v500 = vpop.xlane.xlu0 %499
        %vm501 = vcmp.gt.f32.partialorder %v497, -5e+29
        %vm502 = vcmp.gt.f32.partialorder %v500, -5e+29
        %v503 = vsel %vm501, %v497, 0.0
        %v504 = vsel %vm502, %v500, 0.0
        %v505 = vsub.f32 %v488, %v503
        %v506 = vsub.f32 %v491, %v504
        %v507 = vmul.f32 %v505, 1.442695
        %v508 = vpow.pop %v507
        %v509 = vmul.f32 %v506, 1.442695
        %v510 = vpow.pop %v509
        %v511 = vsel %vm494, %v508, 0.0
        %512 = vadd.xlane.f32.xlu0 %v511
        %v513 = vpop.xlane.xlu0 %512
        %v514 = vsel %vm494, %v510, 0.0
        %515 = vadd.xlane.f32.xlu0 %v514
        %v516 = vpop.xlane.xlu0 %515
        %vm517 = vcmp.gt.f32.partialorder %v513, 0.0
        %vm518 = vcmp.gt.f32.partialorder %v516, 0.0
        %v519 = vsel %vm517, %v513, 1.0
        %v520 = vsel %vm518, %v516, 1.0
        %v521 = vrcp.pop %v519
        %v522 = vrcp.pop %v520
        %v523 = vmul.f32 %v508, %v521
        %v524 = vmul.f32 %v510, %v522
        %v525 = vpack.c.bf16 %v524, %v523
        %527 = vrot.lane.b32.xlu0 %v446, 96
        %v528 = vpop.permute.xlu0 %527
        %532 = vrot.lane.b32.xlu0 %v381, 96
        %v533 = vpop.permute.xlu0 %532
        %534 = vrot.lane.b32.xlu0 %v384, 96
        %v535 = vpop.permute.xlu0 %534
        %v539 = vsel %vm494, %v525, 0
        %541 = vmatprep.subr.bf16.mxu0 0
        %542 = vmatpush1.bf16.msra.mxu0 %v528
        %543 = vmatprep.subr.bf16.mxu0 0
        %544 = vmatpush1.bf16.msra.mxu0 0
        %545 = vmatprep.subr.bf16.mxu0 0
        %546 = vmatpush1.bf16.msra.mxu0 0
        %547 = vmatprep.subr.bf16.mxu0 0
        %548 = vmatpush1.bf16.msra.mxu0 0
        %549 = vmatprep.subr.bf16.mxu0 0
        %550 = vmatpush1.bf16.msra.mxu0 0
        %551 = vmatprep.subr.bf16.mxu0 0
        %552 = vmatpush1.bf16.msra.mxu0 0
        %553 = vmatprep.subr.bf16.mxu0 0
        %554 = vmatpush1.bf16.msra.mxu0 0
        %555 = vmatprep.subr.bf16.mxu0 0
        %556 = vmatpush1.bf16.msra.mxu0 0
        %557 = vmatprep.subr.bf16.mxu0 0
        %558 = vmatpush1.bf16.msra.mxu0 0
        %559 = vmatprep.subr.bf16.mxu0 0
        %560 = vmatpush1.bf16.msra.mxu0 0
        %561 = vmatprep.subr.bf16.mxu0 0
        %562 = vmatpush1.bf16.msra.mxu0 0
        %563 = vmatprep.subr.bf16.mxu0 0
        %564 = vmatpush1.bf16.msra.mxu0 0
        %565 = vmatprep.subr.bf16.mxu0 0
        %566 = vmatpush1.bf16.msra.mxu0 0
        %567 = vmatprep.subr.bf16.mxu0 0
        %568 = vmatpush1.bf16.msra.mxu0 0
        %569 = vmatprep.subr.bf16.mxu0 0
        %570 = vmatpush1.bf16.msra.mxu0 0
        %571 = vmatprep.subr.bf16.mxu0 0
        %572 = vmatpush1.bf16.msra.mxu0 0
        %573 = vmatprep.mubr.bf16.mxu0 0
        %574 = vmatmul.mubr.bf16.gmra.mrb[0].mxu0 %v539
        %v575 = vpop.f32.mrb[0].mxu0
        %v576 = vadd.f32 %v533, %v575
        %v577 = vpop.f32.mrb[0].mxu0
        %v578 = vpop.f32.mrb[0].mxu0
        %v579 = vadd.f32 %v535, %v578
        %v580 = vpop.f32.mrb[0].mxu0
        %581 = vdwg.mxu0
        %v582 = vmax.f32 %v576, 0.0
        %v583 = vmax.f32 %v579, 0.0
        %p584 = scmp.lt.s32.totalorder %s22, 1
        // Predicated region
        $region49: #{tpu_custom_call.1} parent=35 // pred_check
          %p585 = pneg %p584
        $region50: #{tpu_custom_call.1} parent=35 // pred_check_branch
          %587 = sbr.rel (%p585) target = $region52
        $region51: #{tpu_custom_call.1} parent=35 // pred_region
          %v588 = vpack.c.bf16 %v583, %v582
          %589 = vst.msk [vmem:[%s303] sm:$0xff] %vm342, %v588
        $region52: #{tpu_custom_call.1} parent=35 // pred_fallthru
          _
        %p590 = scmp.eq.s32.totalorder %s22, 1
        // Predicated region
        $region53: #{tpu_custom_call.1} parent=35 // pred_check
          %p591 = pneg %p590
        $region54: #{tpu_custom_call.1} parent=35 // pred_check_branch
          %593 = sbr.rel (%p591) target = $region56
        $region55: #{tpu_custom_call.1} parent=35 // pred_region
          %594 = vst.msk [vmem:[#allocation9] sm:$0xff] %vm342, %v582
          %595 = vst.msk [vmem:[#allocation9 + $0x8] sm:$0xff] %vm342, %v583
        $region56: #{tpu_custom_call.1} parent=35 // pred_fallthru
          _
        // Predicated region
        $region57: #{tpu_custom_call.1} parent=35 // pred_check
          %p596 = pneg %p147
        $region58: #{tpu_custom_call.1} parent=35 // pred_check_branch
          %598 = sbr.rel (%p596) target = $region60
        $region59: #{tpu_custom_call.1} parent=35 // pred_region
          %s599 = smul.u32 2, %s23
          %s601 = ssub.s32 256, 256
          %602 = vsyncadd [#allocation5], %s601
          %s603 = smul.addr %s599, 128
          %s604 = scalar_lea.hbm %s4, %s603
          %s605 = sshll.u32 [#allocation9], 4
          %s606 = int_to_ptr.vmem [resolvable:$true] %s605
          %611 = dma.vmem_to_hbm [thread:$0]  %s606, 256, %s604, [#allocation5], 128, 128, 8
        $region60: #{tpu_custom_call.1} parent=35 // pred_fallthru
          _
        // Predicated region
        $region61: #{tpu_custom_call.1} parent=35 // pred_check
          %p612 = pneg %p147
        $region62: #{tpu_custom_call.1} parent=35 // pred_check_branch
          %614 = sbr.rel (%p612) target = $region64
        $region63: #{tpu_custom_call.1} parent=35 // pred_region
          %615 = dma.done [#allocation5], 256
        $region64: #{tpu_custom_call.1} parent=35 // pred_fallthru
          _
      $region36: #{tpu_custom_call.1} parent=5 // pred_fallthru
        _
      %p616 = scmp.le.s32.totalorder 2, %s13
      // Predicated region
      $region65: #{tpu_custom_call.1} parent=5 // pred_check
        %p617 = pneg %p616
      $region66: #{tpu_custom_call.1} parent=5 // pred_check_branch
        %619 = sbr.rel (%p617) target = $region68
      $region67: #{tpu_custom_call.1} parent=5 // pred_region
        %s620 = ssub.s32 %s13, 2
      $region68: #{tpu_custom_call.1} parent=5 // pred_fallthru
        _
    $region6: #{tpu_custom_call.1} parent=1 // loop_footer
      %s17 = sadd.s32 1, %s13
    $region7: #{tpu_custom_call.1} parent=1 // loop_footer_branch
      %12 = sbr.rel target = $region3
    $region8: #{tpu_custom_call.1} parent=1 // loop_exit
      _
    %621 = vsyncpa [#allocation4], 1
    %s622 = scalar_lea.sflag [#allocation4], 1
    %623 = vsyncpa %s622, 1
    %624 = vsyncpa [#allocation7], 1
    %625 = vsyncpa [#allocation5], 1
    %s626 = scalar_lea.sflag [#allocation5], 1
    %627 = vsyncpa %s626, 1

</llo_original>
